<compile_context>
chip_gen: v7x
topology: tpu7x:2x2x1
jax: 0.10.0
libtpu: 0.0.40
codegen_flags: <defaults>
</compile_context>

<pallas_src>
import jax
import jax.numpy as jnp
from jax import lax
from jax.experimental import pallas as pl
from jax.experimental.pallas import tpu as pltpu

HIDDEN = 32
_LANE = 128


def _round_up(n, m):
    return ((n + m - 1) // m) * m


def _mlp_logits(x_ref, w1_ref, b1_ref, w2_ref, b2_ref, w3_ref, b3_ref):
    """Transposed MLP: returns f32 logits of shape (A, TB) with batch on lanes."""
    x_bf = x_ref[...].astype(jnp.bfloat16)                         # (TB, D) -> bf16 MXU operand
    # (out, in) . (TB, in)^T -> (out, TB): contract last dims of both operands.
    h1 = lax.dot_general(w1_ref[...], x_bf, (((1,), (1,)), ((), ())),
                         preferred_element_type=jnp.float32) + b1_ref[...]
    h1 = jnp.maximum(h1, 0.0)                                       # f32 ReLU (VPU)
    h2 = jnp.dot(w2_ref[...], h1.astype(jnp.bfloat16),
                 preferred_element_type=jnp.float32) + b2_ref[...]
    h2 = jnp.maximum(h2, 0.0)
    logits = jnp.dot(w3_ref[...], h2.astype(jnp.bfloat16),
                     preferred_element_type=jnp.float32) + b3_ref[...]
    return logits                                                   # (A, TB) f32


def _batch_mask(shape, tile_idx, tile_b, batch):
    """Mask of lanes that correspond to real batch rows (block may overhang B)."""
    lane = lax.broadcasted_iota(jnp.int32, shape, 1)
    return (lane + tile_idx * tile_b) < batch


def _make_fused_softmax_kernel(batch, tile_b):
    # Whole batch fits in one lane tile: fused matmuls + ReLU + softmax(dim 0).
    def kernel(x_ref, w1_ref, b1_ref, w2_ref, b2_ref, w3_ref, b3_ref, out_ref):
        logits = _mlp_logits(x_ref, w1_ref, b1_ref, w2_ref, b2_ref, w3_ref, b3_ref)
        valid = _batch_mask(logits.shape, pl.program_id(0), tile_b, batch)
        m = jnp.max(jnp.where(valid, logits, -jnp.inf), axis=1, keepdims=True)
        p = jnp.where(valid, jnp.exp(logits - m), 0.0)
        s = jnp.sum(p, axis=1, keepdims=True)
        out_ref[...] = (p * pl.reciprocal(s, approx=True)).astype(out_ref.dtype)
    return kernel


def _make_logits_stats_kernel(batch, tile_b):
    # Pass 1 of the multi-tile path: logits per tile + online (max, sum) over batch.
    def kernel(x_ref, w1_ref, b1_ref, w2_ref, b2_ref, w3_ref, b3_ref,
               logits_ref, m_ref, s_ref, m_sc, s_sc):
        i = pl.program_id(0)

        @pl.when(i == 0)
        def _():
            m_sc[...] = jnp.full(m_sc.shape, -jnp.inf, m_sc.dtype)
            s_sc[...] = jnp.zeros(s_sc.shape, s_sc.dtype)

        logits = _mlp_logits(x_ref, w1_ref, b1_ref, w2_ref, b2_ref, w3_ref, b3_ref)
        valid = _batch_mask(logits.shape, i, tile_b, batch)
        tile_max = jnp.max(jnp.where(valid, logits, -jnp.inf), axis=1, keepdims=True)
        m_new = jnp.maximum(m_sc[...], tile_max)
        p_sum = jnp.sum(jnp.where(valid, jnp.exp(logits - m_new), 0.0),
                        axis=1, keepdims=True)
        s_sc[...] = s_sc[...] * jnp.exp(m_sc[...] - m_new) + p_sum
        m_sc[...] = m_new
        logits_ref[...] = logits

        @pl.when(i == pl.num_programs(0) - 1)
        def _():
            m_ref[...] = m_sc[...]
            s_ref[...] = s_sc[...]
    return kernel


def _normalize_kernel(logits_ref, m_ref, s_ref, out_ref):
    # Pass 2: batch-parallel normalize (lane-dense stores).
    inv = pl.reciprocal(s_ref[...], approx=True)
    out_ref[...] = (jnp.exp(logits_ref[...] - m_ref[...]) * inv).astype(out_ref.dtype)


def _logits_only_kernel(x_ref, w1_ref, b1_ref, w2_ref, b2_ref, w3_ref, b3_ref, out_ref):
    # num_actions <= 0 variant of the module: Linear(32, 1) head, no softmax.
    out_ref[...] = _mlp_logits(x_ref, w1_ref, b1_ref, w2_ref, b2_ref,
                               w3_ref, b3_ref).astype(out_ref.dtype)


def neural_network_forward(x, params, apply_softmax=True, tile_batch=512):
    """Forward pass of NeuralNetwork(state_dims, num_actions).

    x:      (B, state_dims) float32
    params: kernel-layout params from init_params():
            w1 (32, D), w2 (32, 32), w3 (A, 32) in bf16 (PyTorch (out,in) layout),
            b1/b2/b3 float32 of shape (out, 1).
    Returns (B, A) float32; when apply_softmax=True the softmax is over dim 0
    (the batch), exactly matching nn.Softmax(0) on a 2-D input.
    """
    B, D = x.shape
    A = params["w3"].shape[0]
    H = params["w1"].shape[0]

    tile_b = min(_round_up(tile_batch, _LANE), _round_up(max(B, 1), _LANE))
    n_bt = pl.cdiv(B, tile_b)

    x_spec = pl.BlockSpec((tile_b, D), lambda i: (i, 0))
    param_specs = [
        pl.BlockSpec(params["w1"].shape, lambda i: (0, 0)),
        pl.BlockSpec(params["b1"].shape, lambda i: (0, 0)),
        pl.BlockSpec(params["w2"].shape, lambda i: (0, 0)),
        pl.BlockSpec(params["b2"].shape, lambda i: (0, 0)),
        pl.BlockSpec(params["w3"].shape, lambda i: (0, 0)),
        pl.BlockSpec(params["b3"].shape, lambda i: (0, 0)),
    ]
    args = (x, params["w1"], params["b1"], params["w2"], params["b2"],
            params["w3"], params["b3"])

    mlp_cost = pl.CostEstimate(
        flops=2 * B * (D * H + H * H + H * A) + 6 * B * A,
        transcendentals=B * A,
        bytes_accessed=x.size * 4
        + sum(int(p.size) * p.dtype.itemsize for p in args[1:])
        + A * B * 4,
    )

    if not apply_softmax:
        out_ab = pl.pallas_call(
            _logits_only_kernel,
            out_shape=jax.ShapeDtypeStruct((A, B), jnp.float32),
            grid_spec=pltpu.PrefetchScalarGridSpec(
                num_scalar_prefetch=0, grid=(n_bt,),
                in_specs=[x_spec] + param_specs,
                out_specs=pl.BlockSpec((A, tile_b), lambda i: (0, i))),
            compiler_params=pltpu.CompilerParams(dimension_semantics=("parallel",)),
            cost_estimate=mlp_cost,
        )(*args)
        return out_ab.T

    if n_bt == 1:
        probs_ab = pl.pallas_call(
            _make_fused_softmax_kernel(B, tile_b),
            out_shape=jax.ShapeDtypeStruct((A, B), jnp.float32),
            grid_spec=pltpu.PrefetchScalarGridSpec(
                num_scalar_prefetch=0, grid=(1,),
                in_specs=[x_spec] + param_specs,
                out_specs=pl.BlockSpec((A, tile_b), lambda i: (0, 0))),
            compiler_params=pltpu.CompilerParams(dimension_semantics=("arbitrary",)),
            cost_estimate=mlp_cost,
        )(*args)
        return probs_ab.T

    # Multi-tile batch: softmax(dim 0) couples tiles -> two-pass scheme.
    logits_pad, m, s = pl.pallas_call(
        _make_logits_stats_kernel(B, tile_b),
        out_shape=(jax.ShapeDtypeStruct((A, n_bt * tile_b), jnp.float32),
                   jax.ShapeDtypeStruct((A, 1), jnp.float32),
                   jax.ShapeDtypeStruct((A, 1), jnp.float32)),
        grid_spec=pltpu.PrefetchScalarGridSpec(
            num_scalar_prefetch=0, grid=(n_bt,),
            in_specs=[x_spec] + param_specs,
            out_specs=(pl.BlockSpec((A, tile_b), lambda i: (0, i)),
                       pl.BlockSpec((A, 1), lambda i: (0, 0)),
                       pl.BlockSpec((A, 1), lambda i: (0, 0))),
            scratch_shapes=[pltpu.VMEM((A, 1), jnp.float32),
                            pltpu.VMEM((A, 1), jnp.float32)]),
        compiler_params=pltpu.CompilerParams(dimension_semantics=("arbitrary",)),
        cost_estimate=mlp_cost,
    )(*args)

    probs_ab = pl.pallas_call(
        _normalize_kernel,
        out_shape=jax.ShapeDtypeStruct((A, B), jnp.float32),
        grid_spec=pltpu.PrefetchScalarGridSpec(
            num_scalar_prefetch=0, grid=(n_bt,),
            in_specs=[pl.BlockSpec((A, tile_b), lambda i: (0, i)),
                      pl.BlockSpec((A, 1), lambda i: (0, 0)),
                      pl.BlockSpec((A, 1), lambda i: (0, 0))],
            out_specs=pl.BlockSpec((A, tile_b), lambda i: (0, i))),
        compiler_params=pltpu.CompilerParams(dimension_semantics=("parallel",)),
        cost_estimate=pl.CostEstimate(flops=2 * B * A, transcendentals=B * A,
                                      bytes_accessed=2 * A * B * 4),
    )(logits_pad, m, s)
    return probs_ab.T


def init_params(key, state_dims, num_actions, hidden=HIDDEN):
    """PyTorch nn.Linear-default init (U[-1/sqrt(fan_in), 1/sqrt(fan_in)]),
    stored kernel-ready once: (out, in) bf16 weights, (out, 1) f32 biases."""
    out_last = num_actions if num_actions > 0 else 1
    ks = jax.random.split(key, 6)

    def lin(kw, kb, fan_in, fan_out):
        bound = 1.0 / jnp.sqrt(jnp.float32(fan_in))
        w = jax.random.uniform(kw, (fan_out, fan_in), jnp.float32, -bound, bound)
        b = jax.random.uniform(kb, (fan_out,), jnp.float32, -bound, bound)
        return w.astype(jnp.bfloat16), b.reshape(fan_out, 1)

    w1, b1 = lin(ks[0], ks[1], state_dims, hidden)
    w2, b2 = lin(ks[2], ks[3], hidden, hidden)
    w3, b3 = lin(ks[4], ks[5], hidden, out_last)
    return {"w1": w1, "b1": b1, "w2": w2, "b2": b2, "w3": w3, "b3": b3}


def _reference_forward(x, params, apply_softmax=True):
    # Pure-JAX reference mirroring the PyTorch module semantics (f32 math).
    w1 = params["w1"].astype(jnp.float32)
    w2 = params["w2"].astype(jnp.float32)
    w3 = params["w3"].astype(jnp.float32)
    b1 = params["b1"].reshape(-1)
    b2 = params["b2"].reshape(-1)
    b3 = params["b3"].reshape(-1)
    h1 = jnp.maximum(x @ w1.T + b1, 0.0)
    h2 = jnp.maximum(h1 @ w2.T + b2, 0.0)
    logits = h2 @ w3.T + b3
    return jax.nn.softmax(logits, axis=0) if apply_softmax else logits


if __name__ == "__main__":
    key = jax.random.PRNGKey(0)
    k_x, k_p, k_x2 = jax.random.split(key, 3)

    state_dims = 8
    num_actions = 4
    batch = 2

    params = init_params(k_p, state_dims, num_actions)
    x = jax.random.normal(k_x, (batch, state_dims), dtype=jnp.float32)

    # Policy head (Softmax over dim 0), single-tile fused path.
    out = jax.block_until_ready(neural_network_forward(x, params))
    ref = _reference_forward(x, params)
    assert out.shape == (batch, num_actions)
    assert jnp.allclose(out, ref, atol=1e-2, rtol=1e-2), (out, ref)
    assert jnp.allclose(out.sum(axis=0), 1.0, atol=5e-3)

    # Larger ragged batch exercises the two-pass cross-tile softmax path.
    xb = jax.random.normal(k_x2, (520, state_dims), dtype=jnp.float32)
    outb = jax.block_until_ready(neural_network_forward(xb, params, tile_batch=512))
    refb = _reference_forward(xb, params)
    assert jnp.allclose(outb, refb, atol=1e-2, rtol=1e-2)

    # Value head (num_actions <= 0): Linear(32, 1), no softmax.
    vparams = init_params(k_p, state_dims, 0)
    v = jax.block_until_ready(neural_network_forward(x, vparams, apply_softmax=False))
    vref = _reference_forward(x, vparams, apply_softmax=False)
    assert v.shape == (batch, 1)
    assert jnp.allclose(v, vref, atol=1e-2, rtol=1e-2)

    print("KERNEL_OK")
</pallas_src>

<mosaic_0001>
module attributes {stable_mosaic.version = 11 : i64} {
  func.func @kernel(%arg0: i32, %arg1: memref<128x8xf32, #tpu.memory_space<vmem>>, %arg2: memref<32x8xbf16, #tpu.memory_space<vmem>>, %arg3: memref<32x1xf32, #tpu.memory_space<vmem>>, %arg4: memref<32x32xbf16, #tpu.memory_space<vmem>>, %arg5: memref<32x1xf32, #tpu.memory_space<vmem>>, %arg6: memref<4x32xbf16, #tpu.memory_space<vmem>>, %arg7: memref<4x1xf32, #tpu.memory_space<vmem>>, %arg8: memref<4x128xf32, #tpu.memory_space<vmem>>) attributes {dimension_semantics = [#tpu.dimension_semantics<arbitrary>], iteration_bounds = array<i64: 1>, scalar_prefetch = 0 : i64, scratch_operands = 0 : i64, tpu.core_type = #tpu.core_type<tc>, window_params = [{transform_indices = @transform_0, window_bounds = array<i64: 128, 8>}, {pipeline_mode = #tpu.pipeline_mode<synchronous>, transform_indices = @transform_1, window_bounds = array<i64: 32, 8>}, {pipeline_mode = #tpu.pipeline_mode<synchronous>, transform_indices = @transform_2, window_bounds = array<i64: 32, 1>}, {pipeline_mode = #tpu.pipeline_mode<synchronous>, transform_indices = @transform_3, window_bounds = array<i64: 32, 32>}, {pipeline_mode = #tpu.pipeline_mode<synchronous>, transform_indices = @transform_4, window_bounds = array<i64: 32, 1>}, {pipeline_mode = #tpu.pipeline_mode<synchronous>, transform_indices = @transform_5, window_bounds = array<i64: 4, 32>}, {pipeline_mode = #tpu.pipeline_mode<synchronous>, transform_indices = @transform_6, window_bounds = array<i64: 4, 1>}, {transform_indices = @transform_7, window_bounds = array<i64: 4, 128>}]} {
    %c0 = arith.constant 0 : index
    %c0_0 = arith.constant 0 : index
    %0 = vector.load %arg1[%c0, %c0_0] : memref<128x8xf32, #tpu.memory_space<vmem>>, vector<128x8xf32>
    %1 = arith.truncf %0 : vector<128x8xf32> to vector<128x8xbf16>
    %c0_1 = arith.constant 0 : index
    %c0_2 = arith.constant 0 : index
    %2 = vector.load %arg2[%c0_1, %c0_2] : memref<32x8xbf16, #tpu.memory_space<vmem>>, vector<32x8xbf16>
    %cst = arith.constant dense<0.000000e+00> : vector<32x128xf32>
    %3 = tpu.matmul %2, %1, %cst {dimension_numbers = #tpu.dot_dimension_numbers<[1], [1], [0], [0], [0, 0, 1, 0], [], []>} : vector<32x8xbf16>, vector<128x8xbf16>, vector<32x128xf32> -> vector<32x128xf32>
    %c0_3 = arith.constant 0 : index
    %c0_4 = arith.constant 0 : index
    %4 = vector.load %arg3[%c0_3, %c0_4] : memref<32x1xf32, #tpu.memory_space<vmem>>, vector<32x1xf32>
    %5 = vector.broadcast %4 : vector<32x1xf32> to vector<32x128xf32>
    %6 = arith.addf %3, %5 : vector<32x128xf32>
    %cst_5 = arith.constant 0.000000e+00 : f32
    %7 = vector.broadcast %cst_5 : f32 to vector<32x128xf32>
    %8 = arith.maximumf %6, %7 : vector<32x128xf32>
    %c0_6 = arith.constant 0 : index
    %c0_7 = arith.constant 0 : index
    %9 = vector.load %arg4[%c0_6, %c0_7] : memref<32x32xbf16, #tpu.memory_space<vmem>>, vector<32x32xbf16>
    %10 = arith.truncf %8 : vector<32x128xf32> to vector<32x128xbf16>
    %cst_8 = arith.constant dense<0.000000e+00> : vector<32x128xf32>
    %11 = tpu.matmul %9, %10, %cst_8 {dimension_numbers = #tpu.dot_dimension_numbers<[1], [0], [0], [1], [0, 0, 1, 1], [], []>} : vector<32x32xbf16>, vector<32x128xbf16>, vector<32x128xf32> -> vector<32x128xf32>
    %c0_9 = arith.constant 0 : index
    %c0_10 = arith.constant 0 : index
    %12 = vector.load %arg5[%c0_9, %c0_10] : memref<32x1xf32, #tpu.memory_space<vmem>>, vector<32x1xf32>
    %13 = vector.broadcast %12 : vector<32x1xf32> to vector<32x128xf32>
    %14 = arith.addf %11, %13 : vector<32x128xf32>
    %cst_11 = arith.constant 0.000000e+00 : f32
    %15 = vector.broadcast %cst_11 : f32 to vector<32x128xf32>
    %16 = arith.maximumf %14, %15 : vector<32x128xf32>
    %c0_12 = arith.constant 0 : index
    %c0_13 = arith.constant 0 : index
    %17 = vector.load %arg6[%c0_12, %c0_13] : memref<4x32xbf16, #tpu.memory_space<vmem>>, vector<4x32xbf16>
    %18 = arith.truncf %16 : vector<32x128xf32> to vector<32x128xbf16>
    %cst_14 = arith.constant dense<0.000000e+00> : vector<4x128xf32>
    %19 = tpu.matmul %17, %18, %cst_14 {dimension_numbers = #tpu.dot_dimension_numbers<[1], [0], [0], [1], [0, 0, 1, 1], [], []>} : vector<4x32xbf16>, vector<32x128xbf16>, vector<4x128xf32> -> vector<4x128xf32>
    %c0_15 = arith.constant 0 : index
    %c0_16 = arith.constant 0 : index
    %20 = vector.load %arg7[%c0_15, %c0_16] : memref<4x1xf32, #tpu.memory_space<vmem>>, vector<4x1xf32>
    %21 = vector.broadcast %20 : vector<4x1xf32> to vector<4x128xf32>
    %22 = arith.addf %19, %21 : vector<4x128xf32>
    %23 = tpu.iota {dimensions = array<i32: 1>} : vector<4x128xi32>
    %c128_i32 = arith.constant 128 : i32
    %24 = arith.muli %arg0, %c128_i32 : i32
    %25 = vector.broadcast %24 : i32 to vector<4x128xi32>
    %26 = arith.addi %23, %25 : vector<4x128xi32>
    %c2_i32 = arith.constant 2 : i32
    %27 = vector.broadcast %c2_i32 : i32 to vector<4x128xi32>
    %28 = arith.cmpi slt, %26, %27 : vector<4x128xi32>
    %cst_17 = arith.constant 0xFF800000 : f32
    %29 = vector.broadcast %cst_17 : f32 to vector<4x128xf32>
    %30 = arith.select %28, %22, %29 : vector<4x128xi1>, vector<4x128xf32>
    %cst_18 = arith.constant dense<0xFF800000> : vector<4xf32>
    %31 = vector.multi_reduction <maximumf>, %30, %cst_18 [1] : vector<4x128xf32> to vector<4xf32>
    %32 = vector.shape_cast %31 : vector<4xf32> to vector<4x1xf32>
    %33 = vector.broadcast %32 : vector<4x1xf32> to vector<4x128xf32>
    %34 = arith.subf %22, %33 : vector<4x128xf32>
    %35 = math.exp %34 : vector<4x128xf32>
    %cst_19 = arith.constant 0.000000e+00 : f32
    %36 = vector.broadcast %cst_19 : f32 to vector<4x128xf32>
    %37 = arith.select %28, %35, %36 : vector<4x128xi1>, vector<4x128xf32>
    %cst_20 = arith.constant dense<0.000000e+00> : vector<4xf32>
    %38 = vector.multi_reduction <add>, %37, %cst_20 [1] : vector<4x128xf32> to vector<4xf32>
    %39 = vector.shape_cast %38 : vector<4xf32> to vector<4x1xf32>
    %40 = tpu.reciprocal %39 {approx = true} : vector<4x1xf32> -> vector<4x1xf32>
    %41 = vector.broadcast %40 : vector<4x1xf32> to vector<4x128xf32>
    %42 = arith.mulf %37, %41 : vector<4x128xf32>
    %c0_21 = arith.constant 0 : index
    %c0_22 = arith.constant 0 : index
    %43 = vector.load %arg8[%c0_21, %c0_22] : memref<4x128xf32, #tpu.memory_space<vmem>>, vector<4x128xf32>
    tpu.vector_store %arg8[%c0_21, %c0_22], %42 {strides = array<i32>} : memref<4x128xf32, #tpu.memory_space<vmem>>, vector<4x128xf32>,
    return
  }
  func.func @transform_0(%arg0: i32) -> (i32, i32) {
    %c0_i32 = arith.constant 0 : i32
    %c0_i32_0 = arith.constant 0 : i32
    return %arg0, %c0_i32 : i32, i32
  }
  func.func @transform_1(%arg0: i32) -> (i32, i32) {
    %c0_i32 = arith.constant 0 : i32
    %c0_i32_0 = arith.constant 0 : i32
    %c0_i32_1 = arith.constant 0 : i32
    return %c0_i32, %c0_i32_0 : i32, i32
  }
  func.func @transform_2(%arg0: i32) -> (i32, i32) {
    %c0_i32 = arith.constant 0 : i32
    %c0_i32_0 = arith.constant 0 : i32
    %c0_i32_1 = arith.constant 0 : i32
    return %c0_i32, %c0_i32_0 : i32, i32
  }
  func.func @transform_3(%arg0: i32) -> (i32, i32) {
    %c0_i32 = arith.constant 0 : i32
    %c0_i32_0 = arith.constant 0 : i32
    %c0_i32_1 = arith.constant 0 : i32
    return %c0_i32, %c0_i32_0 : i32, i32
  }
  func.func @transform_4(%arg0: i32) -> (i32, i32) {
    %c0_i32 = arith.constant 0 : i32
    %c0_i32_0 = arith.constant 0 : i32
    %c0_i32_1 = arith.constant 0 : i32
    return %c0_i32, %c0_i32_0 : i32, i32
  }
  func.func @transform_5(%arg0: i32) -> (i32, i32) {
    %c0_i32 = arith.constant 0 : i32
    %c0_i32_0 = arith.constant 0 : i32
    %c0_i32_1 = arith.constant 0 : i32
    return %c0_i32, %c0_i32_0 : i32, i32
  }
  func.func @transform_6(%arg0: i32) -> (i32, i32) {
    %c0_i32 = arith.constant 0 : i32
    %c0_i32_0 = arith.constant 0 : i32
    %c0_i32_1 = arith.constant 0 : i32
    return %c0_i32, %c0_i32_0 : i32, i32
  }
  func.func @transform_7(%arg0: i32) -> (i32, i32) {
    %c0_i32 = arith.constant 0 : i32
    %c0_i32_0 = arith.constant 0 : i32
    %c0_i32_1 = arith.constant 0 : i32
    return %c0_i32, %c0_i32_0 : i32, i32
  }
}

</mosaic_0001>

<llo_original>
// kernel: tpu_custom_call.1
$region0: #{tpu_custom_call.1}
  #allocation0 [shape = 'u32[]', space=smem, size = 0x4, offset = 0x4, fixed_abs, tag = 'smem constant byte address 0x4 - core index']
  #allocation1 [shape = 'u32[144,128]{1,0:T(1,128)}', space=vmem, size = 0x12000, scoped, tag = 'internal scratch']
  %s0 = inlined_call_operand.vmem [shape: f32[2,8], index: 0, kind: input, shape index: {}]
  %s1 = inlined_call_operand.vmem [shape: bf16[32,8], index: 1, kind: input, shape index: {}]
  %s2 = inlined_call_operand.vmem [shape: f32[32,1], index: 2, kind: input, shape index: {}]
  %s3 = inlined_call_operand.vmem [shape: bf16[32,32], index: 3, kind: input, shape index: {}]
  %s4 = inlined_call_operand.vmem [shape: f32[32,1], index: 4, kind: input, shape index: {}]
  %s5 = inlined_call_operand.vmem [shape: bf16[4,32], index: 5, kind: input, shape index: {}]
  %s6 = inlined_call_operand.vmem [shape: f32[4,1], index: 6, kind: input, shape index: {}]
  %s7 = inlined_call_operand.vmem [shape: f32[4,2], index: 7, kind: output, shape index: {}]
  %s8 = sld [smem:[#allocation0]]
  $region38: #{tpu_custom_call.1} parent=0
    _
  %s10 = ssub.s32 1, %s8
  %s11 = scalar_select 0, %s10, %s8
  // Predicated region
  $region2: #{tpu_custom_call.1} parent=0 // pred_check
    _
  $region3: #{tpu_custom_call.1} parent=0 // pred_check_branch
    %13 = sbr.rel (0) target = $region5
  $region4: #{tpu_custom_call.1} parent=0 // pred_region
    _
  $region5: #{tpu_custom_call.1} parent=0 // pred_fallthru
    _
  // Predicated region
  $region6: #{tpu_custom_call.1} parent=0 // pred_check
    _
  $region7: #{tpu_custom_call.1} parent=0 // pred_check_branch
    %15 = sbr.rel (0) target = $region9
  $region8: #{tpu_custom_call.1} parent=0 // pred_region
    _
  $region9: #{tpu_custom_call.1} parent=0 // pred_fallthru
    _
  // Predicated region
  $region10: #{tpu_custom_call.1} parent=0 // pred_check
    _
  $region11: #{tpu_custom_call.1} parent=0 // pred_check_branch
    %17 = sbr.rel (0) target = $region13
  $region12: #{tpu_custom_call.1} parent=0 // pred_region
    _
  $region13: #{tpu_custom_call.1} parent=0 // pred_fallthru
    _
  // Predicated region
  $region14: #{tpu_custom_call.1} parent=0 // pred_check
    _
  $region15: #{tpu_custom_call.1} parent=0 // pred_check_branch
    %19 = sbr.rel (0) target = $region17
  $region16: #{tpu_custom_call.1} parent=0 // pred_region
    _
  $region17: #{tpu_custom_call.1} parent=0 // pred_fallthru
    _
  // Predicated region
  $region18: #{tpu_custom_call.1} parent=0 // pred_check
    _
  $region19: #{tpu_custom_call.1} parent=0 // pred_check_branch
    %21 = sbr.rel (0) target = $region21
  $region20: #{tpu_custom_call.1} parent=0 // pred_region
    _
  $region21: #{tpu_custom_call.1} parent=0 // pred_fallthru
    _
  // Predicated region
  $region22: #{tpu_custom_call.1} parent=0 // pred_check
    _
  $region23: #{tpu_custom_call.1} parent=0 // pred_check_branch
    %23 = sbr.rel (0) target = $region25
  $region24: #{tpu_custom_call.1} parent=0 // pred_region
    _
  $region25: #{tpu_custom_call.1} parent=0 // pred_fallthru
    _
  // Predicated region
  $region26: #{tpu_custom_call.1} parent=0 // pred_check
    _
  $region27: #{tpu_custom_call.1} parent=0 // pred_check_branch
    %25 = sbr.rel (0) target = $region29
  $region28: #{tpu_custom_call.1} parent=0 // pred_region
    _
  $region29: #{tpu_custom_call.1} parent=0 // pred_fallthru
    _
  %v27 = vld [vmem:[%s0] sm:$0xff]
  %v28 = vld [vmem:[%s0 + $0x8] sm:$0xff]
  %v29 = vld [vmem:[%s0 + $0x10] sm:$0xff]
  %v30 = vld [vmem:[%s0 + $0x18] sm:$0xff]
  %v31 = vld [vmem:[%s0 + $0x20] sm:$0xff]
  %v32 = vld [vmem:[%s0 + $0x28] sm:$0xff]
  %v33 = vld [vmem:[%s0 + $0x30] sm:$0xff]
  %v34 = vld [vmem:[%s0 + $0x38] sm:$0xff]
  %v35 = vld [vmem:[%s0 + $0x40] sm:$0xff]
  %v36 = vld [vmem:[%s0 + $0x48] sm:$0xff]
  %v37 = vld [vmem:[%s0 + $0x50] sm:$0xff]
  %v38 = vld [vmem:[%s0 + $0x58] sm:$0xff]
  %v39 = vld [vmem:[%s0 + $0x60] sm:$0xff]
  %v40 = vld [vmem:[%s0 + $0x68] sm:$0xff]
  %v41 = vld [vmem:[%s0 + $0x70] sm:$0xff]
  %v42 = vld [vmem:[%s0 + $0x78] sm:$0xff]
  %v43 = vpack.c.bf16 %v28, %v27
  %v44 = vpack.c.bf16 %v30, %v29
  %v45 = vpack.c.bf16 %v32, %v31
  %v46 = vpack.c.bf16 %v34, %v33
  %v47 = vpack.c.bf16 %v36, %v35
  %v48 = vpack.c.bf16 %v38, %v37
  %v49 = vpack.c.bf16 %v40, %v39
  %v50 = vpack.c.bf16 %v42, %v41
  %v51 = vld [vmem:[%s1] sm:$0xf]
  %v52 = vld [vmem:[%s1 + $0x4] sm:$0xf]
  %v53 = vld [vmem:[%s1 + $0x8] sm:$0xf]
  %v54 = vld [vmem:[%s1 + $0xc] sm:$0xf]
  %v55 = vld [vmem:[%s2] sm:$0xff]
  %v56 = vld [vmem:[%s2 + $0x8] sm:$0xff]
  %v57 = vld [vmem:[%s2 + $0x10] sm:$0xff]
  %v58 = vld [vmem:[%s2 + $0x18] sm:$0xff]
  %60 = vset.pattern.permute.xlu0 0
  %61 = vperm.xlu0 %60, %v55
  %v62 = vpop.permute.xlu0 %61
  %65 = vset.pattern.permute.xlu0 0
  %66 = vperm.xlu0 %65, %v56
  %v67 = vpop.permute.xlu0 %66
  %70 = vset.pattern.permute.xlu0 0
  %71 = vperm.xlu0 %70, %v57
  %v72 = vpop.permute.xlu0 %71
  %75 = vset.pattern.permute.xlu0 0
  %76 = vperm.xlu0 %75, %v58
  %v77 = vpop.permute.xlu0 %76
  %v83 = vunpack.c.l.b16 %v51
  %v84 = vunpack.c.l.b16 %v52
  %v85 = vunpack.c.l.b16 %v53
  %v86 = vunpack.c.l.b16 %v54
  %v87 = vpack.c.b16 %v84, %v83
  %v88 = vpack.c.b16 %v86, %v85
  %vm89 = vcmask 64512
  %v91 = vsel %vm89, %v87, 0
  %v94 = vsel %vm89, %v88, 0
  %v97 = vsel %vm89, %v43, 0
  %v100 = vsel %vm89, %v44, 0
  %v103 = vsel %vm89, %v45, 0
  %v106 = vsel %vm89, %v46, 0
  %v109 = vsel %vm89, %v47, 0
  %v112 = vsel %vm89, %v48, 0
  %v115 = vsel %vm89, %v49, 0
  %v118 = vsel %vm89, %v50, 0
  %120 = vmatprep.subr.bf16.mxu0 0
  %121 = vmatpush1.bf16.xpose.msra.mxu0 %v97
  %122 = vmatprep.subr.bf16.mxu0 0
  %123 = vmatpush1.bf16.xpose.msra.mxu0 %v100
  %124 = vmatprep.subr.bf16.mxu0 0
  %125 = vmatpush1.bf16.xpose.msra.mxu0 %v103
  %126 = vmatprep.subr.bf16.mxu0 0
  %127 = vmatpush1.bf16.xpose.msra.mxu0 %v106
  %128 = vmatprep.subr.bf16.mxu0 0
  %129 = vmatpush1.bf16.xpose.msra.mxu0 %v109
  %130 = vmatprep.subr.bf16.mxu0 0
  %131 = vmatpush1.bf16.xpose.msra.mxu0 %v112
  %132 = vmatprep.subr.bf16.mxu0 0
  %133 = vmatpush1.bf16.xpose.msra.mxu0 %v115
  %134 = vmatprep.subr.bf16.mxu0 0
  %135 = vmatpush1.bf16.xpose.msra.mxu0 %v118
  %136 = vmatprep.subr.bf16.mxu0 0
  %137 = vmatpush1.bf16.xpose.msra.mxu0 0
  %138 = vmatprep.subr.bf16.mxu0 0
  %139 = vmatpush1.bf16.xpose.msra.mxu0 0
  %140 = vmatprep.subr.bf16.mxu0 0
  %141 = vmatpush1.bf16.xpose.msra.mxu0 0
  %142 = vmatprep.subr.bf16.mxu0 0
  %143 = vmatpush1.bf16.xpose.msra.mxu0 0
  %144 = vmatprep.subr.bf16.mxu0 0
  %145 = vmatpush1.bf16.xpose.msra.mxu0 0
  %146 = vmatprep.subr.bf16.mxu0 0
  %147 = vmatpush1.bf16.xpose.msra.mxu0 0
  %148 = vmatprep.subr.bf16.mxu0 0
  %149 = vmatpush1.bf16.xpose.msra.mxu0 0
  %150 = vmatprep.subr.bf16.mxu0 0
  %151 = vmatpush1.bf16.xpose.msra.mxu0 0
  %152 = vmatprep.mubr.bf16.mxu0 0
  %153 = vmatmul.mubr.bf16.gmra.mrb[0].mxu0 %v91
  %v154 = vpop.f32.mrb[0].mxu0
  %v155 = vadd.f32 %v62, %v154
  %v156 = vpop.f32.mrb[0].mxu0
  %v157 = vpop.f32.mrb[0].mxu0
  %v158 = vadd.f32 %v67, %v157
  %v159 = vpop.f32.mrb[0].mxu0
  %160 = vmatprep.mubr.bf16.mxu0 0
  %161 = vmatmul.mubr.bf16.gmra.mrb[0].mxu0 %v94
  %v162 = vpop.f32.mrb[0].mxu0
  %v163 = vadd.f32 %v72, %v162
  %v164 = vpop.f32.mrb[0].mxu0
  %v165 = vpop.f32.mrb[0].mxu0
  %v166 = vadd.f32 %v77, %v165
  %v167 = vpop.f32.mrb[0].mxu0
  %168 = vdwg.mxu0
  %v169 = vmax.f32 %v155, 0.0
  %v170 = vmax.f32 %v158, 0.0
  %v171 = vmax.f32 %v163, 0.0
  %v172 = vmax.f32 %v166, 0.0
  %v173 = vld [vmem:[%s3] sm:$0xf]
  %v174 = vld [vmem:[%s3 + $0x4] sm:$0xf]
  %v175 = vld [vmem:[%s3 + $0x8] sm:$0xf]
  %v176 = vld [vmem:[%s3 + $0xc] sm:$0xf]
  %v177 = vpack.c.bf16 %v170, %v169
  %v178 = vpack.c.bf16 %v172, %v171
  %v179 = vld [vmem:[%s4] sm:$0xff]
  %v180 = vld [vmem:[%s4 + $0x8] sm:$0xff]
  %v181 = vld [vmem:[%s4 + $0x10] sm:$0xff]
  %v182 = vld [vmem:[%s4 + $0x18] sm:$0xff]
  %184 = vset.pattern.permute.xlu0 0
  %185 = vperm.xlu0 %184, %v179
  %v186 = vpop.permute.xlu0 %185
  %189 = vset.pattern.permute.xlu0 0
  %190 = vperm.xlu0 %189, %v180
  %v191 = vpop.permute.xlu0 %190
  %194 = vset.pattern.permute.xlu0 0
  %195 = vperm.xlu0 %194, %v181
  %v196 = vpop.permute.xlu0 %195
  %199 = vset.pattern.permute.xlu0 0
  %200 = vperm.xlu0 %199, %v182
  %v201 = vpop.permute.xlu0 %200
  %v207 = vunpack.c.l.b16 %v173
  %v208 = vunpack.c.l.b16 %v174
  %v209 = vunpack.c.l.b16 %v175
  %v210 = vunpack.c.l.b16 %v176
  %v211 = vpack.c.b16 %v208, %v207
  %v212 = vpack.c.b16 %v210, %v209
  %vm213 = vcmask 261120
  %v215 = vsel %vm213, %v211, 0
  %v218 = vsel %vm213, %v212, 0
  %220 = vmatprep.subr.bf16.mxu0 0
  %221 = vmatpush1.bf16.msra.mxu0 %v177
  %222 = vmatprep.subr.bf16.mxu0 0
  %223 = vmatpush1.bf16.msra.mxu0 %v178
  %224 = vmatprep.subr.bf16.mxu0 0
  %225 = vmatpush1.bf16.msra.mxu0 0
  %226 = vmatprep.subr.bf16.mxu0 0
  %227 = vmatpush1.bf16.msra.mxu0 0
  %228 = vmatprep.subr.bf16.mxu0 0
  %229 = vmatpush1.bf16.msra.mxu0 0
  %230 = vmatprep.subr.bf16.mxu0 0
  %231 = vmatpush1.bf16.msra.mxu0 0
  %232 = vmatprep.subr.bf16.mxu0 0
  %233 = vmatpush1.bf16.msra.mxu0 0
  %234 = vmatprep.subr.bf16.mxu0 0
  %235 = vmatpush1.bf16.msra.mxu0 0
  %236 = vmatprep.subr.bf16.mxu0 0
  %237 = vmatpush1.bf16.msra.mxu0 0
  %238 = vmatprep.subr.bf16.mxu0 0
  %239 = vmatpush1.bf16.msra.mxu0 0
  %240 = vmatprep.subr.bf16.mxu0 0
  %241 = vmatpush1.bf16.msra.mxu0 0
  %242 = vmatprep.subr.bf16.mxu0 0
  %243 = vmatpush1.bf16.msra.mxu0 0
  %244 = vmatprep.subr.bf16.mxu0 0
  %245 = vmatpush1.bf16.msra.mxu0 0
  %246 = vmatprep.subr.bf16.mxu0 0
  %247 = vmatpush1.bf16.msra.mxu0 0
  %248 = vmatprep.subr.bf16.mxu0 0
  %249 = vmatpush1.bf16.msra.mxu0 0
  %250 = vmatprep.subr.bf16.mxu0 0
  %251 = vmatpush1.bf16.msra.mxu0 0
  %252 = vmatprep.mubr.bf16.mxu0 0
  %253 = vmatmul.mubr.bf16.gmra.mrb[0].mxu0 %v215
  %v254 = vpop.f32.mrb[0].mxu0
  %v255 = vadd.f32 %v186, %v254
  %v256 = vpop.f32.mrb[0].mxu0
  %v257 = vpop.f32.mrb[0].mxu0
  %v258 = vadd.f32 %v191, %v257
  %v259 = vpop.f32.mrb[0].mxu0
  %260 = vmatprep.mubr.bf16.mxu0 0
  %261 = vmatmul.mubr.bf16.gmra.mrb[0].mxu0 %v218
  %v262 = vpop.f32.mrb[0].mxu0
  %v263 = vadd.f32 %v196, %v262
  %v264 = vpop.f32.mrb[0].mxu0
  %v265 = vpop.f32.mrb[0].mxu0
  %v266 = vadd.f32 %v201, %v265
  %v267 = vpop.f32.mrb[0].mxu0
  %268 = vdwg.mxu0
  %v269 = vmax.f32 %v255, 0.0
  %v270 = vmax.f32 %v258, 0.0
  %v271 = vmax.f32 %v263, 0.0
  %v272 = vmax.f32 %v266, 0.0
  %v273 = vld [vmem:[%s5] sm:$0x3]
  %v274 = vpack.c.bf16 %v270, %v269
  %v275 = vpack.c.bf16 %v272, %v271
  %v276 = vld [vmem:[%s6] sm:$0xf]
  %278 = vset.pattern.permute.xlu0 0
  %279 = vperm.xlu0 %278, %v276
  %v280 = vpop.permute.xlu0 %279
  %v283 = vsel %vm213, %v273, 0
  %285 = vmatprep.subr.bf16.mxu0 0
  %286 = vmatpush1.bf16.msra.mxu0 %v274
  %287 = vmatprep.subr.bf16.mxu0 0
  %288 = vmatpush1.bf16.msra.mxu0 %v275
  %289 = vmatprep.subr.bf16.mxu0 0
  %290 = vmatpush1.bf16.msra.mxu0 0
  %291 = vmatprep.subr.bf16.mxu0 0
  %292 = vmatpush1.bf16.msra.mxu0 0
  %293 = vmatprep.subr.bf16.mxu0 0
  %294 = vmatpush1.bf16.msra.mxu0 0
  %295 = vmatprep.subr.bf16.mxu0 0
  %296 = vmatpush1.bf16.msra.mxu0 0
  %297 = vmatprep.subr.bf16.mxu0 0
  %298 = vmatpush1.bf16.msra.mxu0 0
  %299 = vmatprep.subr.bf16.mxu0 0
  %300 = vmatpush1.bf16.msra.mxu0 0
  %301 = vmatprep.subr.bf16.mxu0 0
  %302 = vmatpush1.bf16.msra.mxu0 0
  %303 = vmatprep.subr.bf16.mxu0 0
  %304 = vmatpush1.bf16.msra.mxu0 0
  %305 = vmatprep.subr.bf16.mxu0 0
  %306 = vmatpush1.bf16.msra.mxu0 0
  %307 = vmatprep.subr.bf16.mxu0 0
  %308 = vmatpush1.bf16.msra.mxu0 0
  %309 = vmatprep.subr.bf16.mxu0 0
  %310 = vmatpush1.bf16.msra.mxu0 0
  %311 = vmatprep.subr.bf16.mxu0 0
  %312 = vmatpush1.bf16.msra.mxu0 0
  %313 = vmatprep.subr.bf16.mxu0 0
  %314 = vmatpush1.bf16.msra.mxu0 0
  %315 = vmatprep.subr.bf16.mxu0 0
  %316 = vmatpush1.bf16.msra.mxu0 0
  %317 = vmatprep.mubr.bf16.mxu0 0
  %318 = vmatmul.mubr.bf16.gmra.mrb[0].mxu0 %v283
  %v319 = vpop.f32.mrb[0].mxu0
  %v320 = vadd.f32 %v280, %v319
  %v321 = vpop.f32.mrb[0].mxu0
  %v322 = vpop.f32.mrb[0].mxu0
  %v323 = vpop.f32.mrb[0].mxu0
  %324 = vdwg.mxu0
  %v325 = vlaneseq
  %v326 = vand.u32 %v325, 127
  %s327 = smul.u32 0, 128
  %v328 = vstv %s327
  %v329 = vadd.s32 %v326, %v328
  %vm330 = vcmp.lt.s32.totalorder %v329, 2
  %v331 = vsel %vm330, %v320, -inf
  %vm332 = vcmask 1043456
  %v333 = vsel %vm332, %v331, -inf
  %334 = vmax.xlane.f32.xlu0 %v333
  %v335 = vpop.xlane.xlu0 %334
  %v336 = vsub.f32 %v320, %v335
  %v337 = vmul.f32 %v336, 1.442695
  %v338 = vpow.pop %v337
  %v339 = vsel %vm330, %v338, 0.0
  %v340 = vsel %vm332, %v339, 0.0
  %341 = vadd.xlane.f32.xlu0 %v340
  %v342 = vpop.xlane.xlu0 %341
  %v343 = vrcp.pop %v342
  %v344 = vmul.f32 %v339, %v343
  %345 = vst [vmem:[%s7] sm:$0xf] %v344
  // Predicated region
  $region30: #{tpu_custom_call.1} parent=0 // pred_check
    _
  $region31: #{tpu_custom_call.1} parent=0 // pred_check_branch
    %347 = sbr.rel (0) target = $region33
  $region32: #{tpu_custom_call.1} parent=0 // pred_region
    _
  $region33: #{tpu_custom_call.1} parent=0 // pred_fallthru
    _
  // Predicated region
  $region34: #{tpu_custom_call.1} parent=0 // pred_check
    _
  $region35: #{tpu_custom_call.1} parent=0 // pred_check_branch
    %349 = sbr.rel (0) target = $region37
  $region36: #{tpu_custom_call.1} parent=0 // pred_region
    _
  $region37: #{tpu_custom_call.1} parent=0 // pred_fallthru
    _

</llo_original>
